<compile_context>
chip_gen: v7x
topology: tpu7x:2x2x1
jax: 0.10.0
libtpu: 0.0.40
codegen_flags: <defaults>
</compile_context>

<pallas_src>
import jax
import jax.numpy as jnp
from jax.experimental import pallas as pl
from jax.experimental.pallas import tpu as pltpu


def create_pos_emb(max_token: int, dim: int, theta: int) -> jnp.ndarray:
    """Exact JAX replica of ROPEEmbedding.create_embedding (float32)."""
    t = jnp.arange(0, dim // 2)
    t = jnp.repeat(t, 2)                                   # [0,0,1,1,...]
    t = (-t * 2.0 / dim).astype(jnp.float32)
    t = jnp.power(jnp.float32(theta), t)                   # (dim,)
    index = jnp.arange(max_token, dtype=jnp.float32)       # (max_token,)
    m = jnp.einsum('i,j->ij', t, index)                    # (dim, max_token)
    cos_m = jnp.cos(m)
    sin_m = jnp.sin(m)
    sin_m = sin_m.at[0::2].multiply(-1.0)                  # negate even feature rows
    pos_emb = jnp.concatenate((cos_m, sin_m), axis=0)      # (2*dim, max_token)
    return pos_emb.T.astype(jnp.float32)                   # (max_token, 2*dim)


def rope_kernel(x_ref, cos_ref, sin_e_ref, sin_o_ref, o_ref):
    # x_ref/o_ref block: (G, TL); cos/sin_e/sin_o blocks: (1, TL), broadcast over G.
    # Pair swap along lanes via two XLU rolls; parity selection and the rolls'
    # wrap-around masking are pre-folded into sin_e (nonzero on even feature
    # lanes) and sin_o (nonzero on odd feature lanes).  TL is even and lane
    # blocks start at even offsets, so pairs never straddle a block edge.
    x = x_ref[...]
    tl = x.shape[-1]
    nxt = pltpu.roll(x, shift=tl - 1, axis=1)   # nxt[i] = x[(i + 1) % tl]
    prv = pltpu.roll(x, shift=1, axis=1)        # prv[i] = x[(i - 1) % tl]
    out = x * cos_ref[...] + nxt * sin_e_ref[...] + prv * sin_o_ref[...]
    o_ref[...] = out.astype(o_ref.dtype)


def _choose_tiles(n_rows, n_lanes, itemsize, tile_bytes, row_quantum,
                  min_grid_steps=4, min_tile_bytes=512 * 1024):
    """Pick (G, TL): legal per the (8,128)/full-extent rule, squarer tiles
    within the byte budget, and enough grid steps to pipeline / shard."""
    def legal(total, quantum):
        if total % quantum == 0:
            return [d for d in range(quantum, total + 1, quantum) if total % d == 0]
        # TODO(synk): non-divisible extents fall back to a single full-extent
        # block; very large non-divisible inputs should be padded by the caller.
        return [total]

    g_opts = legal(n_rows, row_quantum)     # ascending
    tl_opts = legal(n_lanes, 128)           # ascending

    # Lane tile: largest legal TL within a 16K-lane cap that still leaves room
    # for >= 2 row-quanta of rows inside the byte budget (squarer tiles keep
    # the per-step cos/sin bytes (3*TL) small vs. the G*TL useful bytes).
    lane_cap = min(16 * 1024, max(128, tile_bytes // (2 * row_quantum * itemsize)))
    tl = tl_opts[0]
    for t in tl_opts:
        if t <= lane_cap:
            tl = t

    # Row tile: grow G to fill the byte budget.
    g = g_opts[0]
    for gg in g_opts:
        if gg * tl * itemsize <= tile_bytes:
            g = gg

    # Keep the grid from collapsing on inputs big enough to benefit from
    # double-buffer overlap and v7x dual-TC sharding, but never shrink tiles
    # below min_tile_bytes (tiny inputs stay single-tile).
    def steps(g_, tl_):
        return (n_rows // g_) * (n_lanes // tl_)

    while steps(g, tl) < min_grid_steps:
        cand_g = [gg for gg in g_opts
                  if gg < g and gg * tl * itemsize >= min_tile_bytes]
        if cand_g:
            g = cand_g[-1]
            continue
        cand_tl = [t for t in tl_opts
                   if t < tl and g * t * itemsize >= min_tile_bytes]
        if cand_tl:
            tl = cand_tl[-1]
            continue
        break
    return g, tl


def rope_forward(x: jnp.ndarray, pos_emb: jnp.ndarray,
                 *, tile_bytes: int = 2 << 20, donate_x: bool = False) -> jnp.ndarray:
    """x: (B, H, S, D); pos_emb: (max_token, 2*D) float32."""
    B, H, S, D = x.shape
    assert D % 2 == 0, "RoPE pair swap requires an even head dim"
    assert pos_emb.shape[1] == 2 * D and pos_emb.shape[0] >= S

    R, L = B * H, S * D
    x_flat = x.reshape(R, L)                                   # lane-dense layout

    cos_flat = pos_emb[:S, :D].reshape(1, L).astype(jnp.float32)
    sin_flat = pos_emb[:S, D:].reshape(1, L).astype(jnp.float32)
    # Fold the pair-swap parity into the sin tables on the host: even feature
    # lanes pick x[i+1] (nxt), odd lanes pick x[i-1] (prv).  D is even, so the
    # global feature parity equals lane parity and never crosses a 128-lane
    # (or TL) block boundary.
    par = jnp.arange(L, dtype=jnp.int32) % 2
    sin_even = jnp.where(par[None, :] == 0, sin_flat, 0.0)
    sin_odd = jnp.where(par[None, :] == 1, sin_flat, 0.0)

    itemsize = jnp.dtype(x.dtype).itemsize
    row_quantum = {4: 8, 2: 16, 1: 32}.get(itemsize, 8)
    G, TL = _choose_tiles(R, L, itemsize, tile_bytes, row_quantum)

    # Row-block axis innermost (fastest-varying): cos/sin index_map results are
    # unchanged across row steps, so the tables stay VMEM-resident.
    grid = (L // TL, R // G)

    cost = pl.CostEstimate(
        flops=5 * R * L,                        # 3 mul + 2 add per element (rough)
        transcendentals=0,
        bytes_accessed=2 * R * L * itemsize + 3 * L * 4,
    )

    out_flat = pl.pallas_call(
        rope_kernel,
        out_shape=jax.ShapeDtypeStruct((R, L), x.dtype),
        grid_spec=pltpu.PrefetchScalarGridSpec(
            num_scalar_prefetch=0,
            grid=grid,
            in_specs=[
                pl.BlockSpec((G, TL), lambda c, r: (r, c)),   # x tile
                pl.BlockSpec((1, TL), lambda c, r: (0, c)),   # cos   (row-resident)
                pl.BlockSpec((1, TL), lambda c, r: (0, c)),   # sin_e (row-resident)
                pl.BlockSpec((1, TL), lambda c, r: (0, c)),   # sin_o (row-resident)
            ],
            out_specs=pl.BlockSpec((G, TL), lambda c, r: (r, c)),
        ),
        compiler_params=pltpu.CompilerParams(
            dimension_semantics=("parallel", "parallel"),
        ),
        # Alias only when the caller really donates x; otherwise XLA inserts a
        # defensive copy that doubles HBM traffic on this mem-bound kernel.
        input_output_aliases={0: 0} if donate_x else {},
        cost_estimate=cost,
    )(x_flat, cos_flat, sin_even, sin_odd)

    return out_flat.reshape(B, H, S, D)


def rope_reference(x: jnp.ndarray, pos_emb: jnp.ndarray) -> jnp.ndarray:
    """Pure-JAX replica of the PyTorch forward, for verification."""
    S = x.shape[2]
    shape = x.shape
    xf = x.reshape(shape[0], shape[1], -1, 2)[..., ::-1].reshape(shape)
    t = jnp.concatenate((x, xf), axis=-1) * pos_emb[:S, :]
    cos, sin = jnp.split(t, 2, axis=-1)
    return cos + sin


if __name__ == "__main__":
    # Module hyperparameters (deterministic, in-script).
    max_token, dim, theta = 64, 32, 10000
    pos_emb = create_pos_emb(max_token, dim, theta)        # (64, 64)

    # Small input consistent with forward(): (B, H, S, D), S <= max_token, D == dim.
    B, H, S, D = 2, 4, 16, dim
    key = jax.random.PRNGKey(0)
    x = jax.random.normal(key, (B, H, S, D), dtype=jnp.float32)

    out = rope_forward(x, pos_emb)
    out = jax.block_until_ready(out)

    ref = rope_reference(x, pos_emb)
    assert out.shape == (B, H, S, D)
    assert jnp.allclose(out, ref, atol=1e-5, rtol=1e-5), (
        float(jnp.max(jnp.abs(out - ref)))
    )
    print("KERNEL_OK")
</pallas_src>

<mosaic_0001>
module attributes {stable_mosaic.version = 11 : i64} {
  func.func @rope_kernel(%arg0: i32, %arg1: i32, %arg2: memref<8x512xf32, #tpu.memory_space<vmem>>, %arg3: memref<1x512xf32, #tpu.memory_space<vmem>>, %arg4: memref<1x512xf32, #tpu.memory_space<vmem>>, %arg5: memref<1x512xf32, #tpu.memory_space<vmem>>, %arg6: memref<8x512xf32, #tpu.memory_space<vmem>>) attributes {dimension_semantics = [#tpu.dimension_semantics<parallel>, #tpu.dimension_semantics<parallel>], iteration_bounds = array<i64: 1, 1>, scalar_prefetch = 0 : i64, scratch_operands = 0 : i64, tpu.core_type = #tpu.core_type<tc>, window_params = [{transform_indices = @transform_0, window_bounds = array<i64: 8, 512>}, {transform_indices = @transform_1, window_bounds = array<i64: 1, 512>}, {transform_indices = @transform_2, window_bounds = array<i64: 1, 512>}, {transform_indices = @transform_3, window_bounds = array<i64: 1, 512>}, {transform_indices = @transform_4, window_bounds = array<i64: 8, 512>}]} {
    %c0 = arith.constant 0 : index
    %c0_0 = arith.constant 0 : index
    %0 = vector.load %arg2[%c0, %c0_0] : memref<8x512xf32, #tpu.memory_space<vmem>>, vector<8x512xf32>
    %c511_i32 = arith.constant 511 : i32
    %1 = tpu.dynamic_rotate %0 by %c511_i32 dim 1 : vector<8x512xf32>, i32 -> vector<8x512xf32>
    %c1_i32 = arith.constant 1 : i32
    %2 = tpu.dynamic_rotate %0 by %c1_i32 dim 1 : vector<8x512xf32>, i32 -> vector<8x512xf32>
    %c0_1 = arith.constant 0 : index
    %c0_2 = arith.constant 0 : index
    %3 = vector.load %arg3[%c0_1, %c0_2] : memref<1x512xf32, #tpu.memory_space<vmem>>, vector<1x512xf32>
    %4 = vector.broadcast %3 : vector<1x512xf32> to vector<8x512xf32>
    %5 = arith.mulf %0, %4 : vector<8x512xf32>
    %c0_3 = arith.constant 0 : index
    %c0_4 = arith.constant 0 : index
    %6 = vector.load %arg4[%c0_3, %c0_4] : memref<1x512xf32, #tpu.memory_space<vmem>>, vector<1x512xf32>
    %7 = vector.broadcast %6 : vector<1x512xf32> to vector<8x512xf32>
    %8 = arith.mulf %1, %7 : vector<8x512xf32>
    %9 = arith.addf %5, %8 : vector<8x512xf32>
    %c0_5 = arith.constant 0 : index
    %c0_6 = arith.constant 0 : index
    %10 = vector.load %arg5[%c0_5, %c0_6] : memref<1x512xf32, #tpu.memory_space<vmem>>, vector<1x512xf32>
    %11 = vector.broadcast %10 : vector<1x512xf32> to vector<8x512xf32>
    %12 = arith.mulf %2, %11 : vector<8x512xf32>
    %13 = arith.addf %9, %12 : vector<8x512xf32>
    %c0_7 = arith.constant 0 : index
    %c0_8 = arith.constant 0 : index
    %14 = vector.load %arg6[%c0_7, %c0_8] : memref<8x512xf32, #tpu.memory_space<vmem>>, vector<8x512xf32>
    tpu.vector_store %arg6[%c0_7, %c0_8], %13 {strides = array<i32>} : memref<8x512xf32, #tpu.memory_space<vmem>>, vector<8x512xf32>,
    return
  }
  func.func @transform_0(%arg0: i32, %arg1: i32) -> (i32, i32) {
    %c0_i32 = arith.constant 0 : i32
    return %arg1, %arg0 : i32, i32
  }
  func.func @transform_1(%arg0: i32, %arg1: i32) -> (i32, i32) {
    %c0_i32 = arith.constant 0 : i32
    %c0_i32_0 = arith.constant 0 : i32
    return %c0_i32, %arg0 : i32, i32
  }
  func.func @transform_2(%arg0: i32, %arg1: i32) -> (i32, i32) {
    %c0_i32 = arith.constant 0 : i32
    %c0_i32_0 = arith.constant 0 : i32
    return %c0_i32, %arg0 : i32, i32
  }
  func.func @transform_3(%arg0: i32, %arg1: i32) -> (i32, i32) {
    %c0_i32 = arith.constant 0 : i32
    %c0_i32_0 = arith.constant 0 : i32
    return %c0_i32, %arg0 : i32, i32
  }
  func.func @transform_4(%arg0: i32, %arg1: i32) -> (i32, i32) {
    %c0_i32 = arith.constant 0 : i32
    return %arg1, %arg0 : i32, i32
  }
}

</mosaic_0001>

<llo_original>
// kernel: tpu_custom_call.1
$region0: #{tpu_custom_call.1}
  #allocation0 [shape = 'u32[]', space=smem, size = 0x4, offset = 0x4, fixed_abs, tag = 'smem constant byte address 0x4 - core index']
  #allocation1 [shape = 'u32[144,128]{1,0:T(1,128)}', space=vmem, size = 0x12000, scoped, tag = 'internal scratch']
  %s0 = inlined_call_operand.hbm [shape: f32[8,512], index: 0, kind: input, shape index: {}]
  %s1 = inlined_call_operand.hbm [shape: f32[1,512], index: 1, kind: input, shape index: {}]
  %s2 = inlined_call_operand.vmem [shape: f32[1,512], index: 2, kind: input, shape index: {}]
  %s3 = inlined_call_operand.vmem [shape: f32[1,512], index: 3, kind: input, shape index: {}]
  %s4 = inlined_call_operand.hbm [shape: f32[8,512], index: 4, kind: output, shape index: {}]
  %s5 = sld [smem:[#allocation0]]
  $region34: #{tpu_custom_call.1} parent=0
    _
  %s7 = ssub.s32 1, %s5
  %s8 = scalar_select 0, %s7, %s5
  $region1: #{tpu_custom_call.1} parent=0
    #allocation2 [shape = 'u8[16384]{0}', space=vmem, size = 0x4000, scoped, tag = 'input window, operand 0, single buffered']
    #allocation3 [shape = 's32[1]{0}', space=sflag, size = 0x4, scoped, tag = 'scoped memory for tpu_custom_call.1']
    #allocation4 [shape = 's32[1]{0}', space=sflag, size = 0x4, scoped, tag = 'scoped memory for tpu_custom_call.1']
    #allocation5 [shape = 'u8[2048]{0}', space=vmem, size = 0x800, scoped, tag = 'input window, operand 1, single buffered']
    #allocation6 [shape = 's32[1]{0}', space=sflag, size = 0x4, scoped, tag = 'scoped memory for tpu_custom_call.1']
    #allocation7 [shape = 'u8[16384]{0}', space=vmem, size = 0x4000, scoped, tag = 'output window, operand 0, single buffered']
    %9 = vsyncpa [#allocation3], 0
    %10 = vsyncpa [#allocation6], 0
    %11 = vsyncpa [#allocation4], 0
    // Predicated region
    $region2: #{tpu_custom_call.1} parent=1 // pred_check
      _
    $region3: #{tpu_custom_call.1} parent=1 // pred_check_branch
      %13 = sbr.rel (0) target = $region5
    $region4: #{tpu_custom_call.1} parent=1 // pred_region
      %s15 = ssub.s32 512, 512
      %16 = vsyncadd [#allocation3], %s15
      %s18 = sshll.u32 [#allocation2], 4
      %s19 = int_to_ptr.vmem [resolvable:$true] %s18
      %21 = dma.hbm_to_vmem [thread:$0]  %s0, 512, %s19, [#allocation3]
    $region5: #{tpu_custom_call.1} parent=1 // pred_fallthru
      _
    // Predicated region
    $region6: #{tpu_custom_call.1} parent=1 // pred_check
      _
    $region7: #{tpu_custom_call.1} parent=1 // pred_check_branch
      %23 = sbr.rel (0) target = $region9
    $region8: #{tpu_custom_call.1} parent=1 // pred_region
      %s25 = ssub.s32 64, 64
      %26 = vsyncadd [#allocation6], %s25
      %s28 = sshll.u32 [#allocation5], 4
      %s29 = int_to_ptr.vmem [resolvable:$true] %s28
      %31 = dma.hbm_to_vmem [thread:$0]  %s1, 64, %s29, [#allocation6]
    $region9: #{tpu_custom_call.1} parent=1 // pred_fallthru
      _
    // Predicated region
    $region10: #{tpu_custom_call.1} parent=1 // pred_check
      _
    $region11: #{tpu_custom_call.1} parent=1 // pred_check_branch
      %33 = sbr.rel (0) target = $region13
    $region12: #{tpu_custom_call.1} parent=1 // pred_region
      _
    $region13: #{tpu_custom_call.1} parent=1 // pred_fallthru
      _
    // Predicated region
    $region14: #{tpu_custom_call.1} parent=1 // pred_check
      _
    $region15: #{tpu_custom_call.1} parent=1 // pred_check_branch
      %35 = sbr.rel (0) target = $region17
    $region16: #{tpu_custom_call.1} parent=1 // pred_region
      _
    $region17: #{tpu_custom_call.1} parent=1 // pred_fallthru
      _
    // Predicated region
    $region18: #{tpu_custom_call.1} parent=1 // pred_check
      _
    $region19: #{tpu_custom_call.1} parent=1 // pred_check_branch
      %37 = sbr.rel (0) target = $region21
    $region20: #{tpu_custom_call.1} parent=1 // pred_region
      %38 = dma.done [#allocation3], 512
    $region21: #{tpu_custom_call.1} parent=1 // pred_fallthru
      _
    // Predicated region
    $region22: #{tpu_custom_call.1} parent=1 // pred_check
      _
    $region23: #{tpu_custom_call.1} parent=1 // pred_check_branch
      %40 = sbr.rel (0) target = $region25
    $region24: #{tpu_custom_call.1} parent=1 // pred_region
      %41 = dma.done [#allocation6], 64
    $region25: #{tpu_custom_call.1} parent=1 // pred_fallthru
      _
    %v42 = vld [vmem:[#allocation2] sm:$0xff]
    %v43 = vld [vmem:[#allocation2 + $0x8] sm:$0xff]
    %v44 = vld [vmem:[#allocation2 + $0x10] sm:$0xff]
    %v45 = vld [vmem:[#allocation2 + $0x18] sm:$0xff]
    %46 = vrot.lane.b32.xlu0 %v42, 127
    %v47 = vpop.permute.xlu0 %46
    %48 = vrot.lane.b32.xlu0 %v43, 127
    %v49 = vpop.permute.xlu0 %48
    %50 = vrot.lane.b32.xlu0 %v44, 127
    %v51 = vpop.permute.xlu0 %50
    %52 = vrot.lane.b32.xlu0 %v45, 127
    %v53 = vpop.permute.xlu0 %52
    %v54 = vlaneseq
    %v55 = vand.u32 %v54, 127
    %vm56 = vcmp.lt.s32.totalorder %v55, 127
    %v57 = vsel %vm56, %v51, %v53
    %v58 = vsel %vm56, %v49, %v51
    %v59 = vsel %vm56, %v47, %v49
    %v60 = vsel %vm56, %v53, %v47
    %61 = vrot.lane.b32.xlu0 %v42, 1
    %v62 = vpop.permute.xlu0 %61
    %63 = vrot.lane.b32.xlu0 %v43, 1
    %v64 = vpop.permute.xlu0 %63
    %65 = vrot.lane.b32.xlu0 %v44, 1
    %v66 = vpop.permute.xlu0 %65
    %67 = vrot.lane.b32.xlu0 %v45, 1
    %v68 = vpop.permute.xlu0 %67
    %vm69 = vcmp.lt.s32.totalorder %v55, 1
    %v70 = vsel %vm69, %v66, %v68
    %v71 = vsel %vm69, %v64, %v66
    %v72 = vsel %vm69, %v62, %v64
    %v73 = vsel %vm69, %v68, %v62
    %v74 = vld [vmem:[#allocation5] sm:$0xf]
    %v76 = vlaneseq
    %v77 = vshrl.u32 %v76, 7
    %v78 = vsub.s32 0, %v77
    %v79 = vrot.slane %v74, %v78
    %v80 = vlaneseq
    %v81 = vshrl.u32 %v80, 7
    %v82 = vsub.s32 1, %v81
    %v83 = vrot.slane %v74, %v82
    %v84 = vlaneseq
    %v85 = vshrl.u32 %v84, 7
    %v86 = vsub.s32 2, %v85
    %v87 = vrot.slane %v74, %v86
    %v88 = vlaneseq
    %v89 = vshrl.u32 %v88, 7
    %v90 = vsub.s32 3, %v89
    %v91 = vrot.slane %v74, %v90
    %v96 = vmul.f32 %v42, %v79
    %v97 = vmul.f32 %v43, %v83
    %v98 = vmul.f32 %v44, %v87
    %v99 = vmul.f32 %v45, %v91
    %v100 = vld [vmem:[%s2] sm:$0xf]
    %v102 = vlaneseq
    %v103 = vshrl.u32 %v102, 7
    %v104 = vsub.s32 0, %v103
    %v105 = vrot.slane %v100, %v104
    %v106 = vlaneseq
    %v107 = vshrl.u32 %v106, 7
    %v108 = vsub.s32 1, %v107
    %v109 = vrot.slane %v100, %v108
    %v110 = vlaneseq
    %v111 = vshrl.u32 %v110, 7
    %v112 = vsub.s32 2, %v111
    %v113 = vrot.slane %v100, %v112
    %v114 = vlaneseq
    %v115 = vshrl.u32 %v114, 7
    %v116 = vsub.s32 3, %v115
    %v117 = vrot.slane %v100, %v116
    %v122 = vmul.f32 %v59, %v105
    %v123 = vmul.f32 %v58, %v109
    %v124 = vmul.f32 %v57, %v113
    %v125 = vmul.f32 %v60, %v117
    %v126 = vadd.f32 %v96, %v122
    %v127 = vadd.f32 %v97, %v123
    %v128 = vadd.f32 %v98, %v124
    %v129 = vadd.f32 %v99, %v125
    %v130 = vld [vmem:[%s3] sm:$0xf]
    %v132 = vlaneseq
    %v133 = vshrl.u32 %v132, 7
    %v134 = vsub.s32 0, %v133
    %v135 = vrot.slane %v130, %v134
    %v136 = vlaneseq
    %v137 = vshrl.u32 %v136, 7
    %v138 = vsub.s32 1, %v137
    %v139 = vrot.slane %v130, %v138
    %v140 = vlaneseq
    %v141 = vshrl.u32 %v140, 7
    %v142 = vsub.s32 2, %v141
    %v143 = vrot.slane %v130, %v142
    %v144 = vlaneseq
    %v145 = vshrl.u32 %v144, 7
    %v146 = vsub.s32 3, %v145
    %v147 = vrot.slane %v130, %v146
    %v152 = vmul.f32 %v73, %v135
    %v153 = vmul.f32 %v72, %v139
    %v154 = vmul.f32 %v71, %v143
    %v155 = vmul.f32 %v70, %v147
    %v156 = vadd.f32 %v126, %v152
    %v157 = vadd.f32 %v127, %v153
    %v158 = vadd.f32 %v128, %v154
    %v159 = vadd.f32 %v129, %v155
    %160 = vst [vmem:[#allocation7] sm:$0xff] %v156
    %161 = vst [vmem:[#allocation7 + $0x8] sm:$0xff] %v157
    %162 = vst [vmem:[#allocation7 + $0x10] sm:$0xff] %v158
    %163 = vst [vmem:[#allocation7 + $0x18] sm:$0xff] %v159
    // Predicated region
    $region26: #{tpu_custom_call.1} parent=1 // pred_check
      _
    $region27: #{tpu_custom_call.1} parent=1 // pred_check_branch
      %165 = sbr.rel (0) target = $region29
    $region28: #{tpu_custom_call.1} parent=1 // pred_region
      %s167 = ssub.s32 512, 512
      %168 = vsyncadd [#allocation4], %s167
      %s170 = sshll.u32 [#allocation7], 4
      %s171 = int_to_ptr.vmem [resolvable:$true] %s170
      %173 = dma.vmem_to_hbm [thread:$0]  %s171, 512, %s4, [#allocation4]
    $region29: #{tpu_custom_call.1} parent=1 // pred_fallthru
      _
    // Predicated region
    $region30: #{tpu_custom_call.1} parent=1 // pred_check
      _
    $region31: #{tpu_custom_call.1} parent=1 // pred_check_branch
      %175 = sbr.rel (0) target = $region33
    $region32: #{tpu_custom_call.1} parent=1 // pred_region
      %176 = dma.done [#allocation4], 512
    $region33: #{tpu_custom_call.1} parent=1 // pred_fallthru
      _
    %177 = vsyncpa [#allocation3], 1
    %178 = vsyncpa [#allocation6], 1
    %179 = vsyncpa [#allocation4], 1

</llo_original>
